<compile_context>
chip_gen: v7x
topology: tpu7x:2x2x1
jax: 0.10.0
libtpu: 0.0.40
codegen_flags: <defaults>
</compile_context>

<pallas_src>
import functools

import jax
import jax.numpy as jnp
from jax.experimental import pallas as pl
from jax.experimental.pallas import tpu as pltpu


def _cconv_kernel(xr_ref, xi_ref, wa_ref, wb_ref, bf_ref, or_ref, oi_ref):
    # xr/xi : (B_blk, C_in, TILE_L) f32
    # wa    : (2*C_out_pad, C_in) = [[ W_r], [W_i]]   multiplies x_r
    # wb    : (2*C_out_pad, C_in) = [[-W_i], [W_r]]   multiplies x_i
    # bf    : (2*C_out_pad, 1)    = [b_r - b_i ; b_r + b_i]   (pad rows zero)
    b_blk = or_ref.shape[0]
    c_out = or_ref.shape[1]
    c_out_pad = wa_ref.shape[0] // 2

    wa = wa_ref[...]
    wb = wb_ref[...]
    bf = bf_ref[...]

    # Static unroll over the batch block: plain 2-D MXU dots, lane-dense
    # stores, no batched-dot / transpose lowering risk. b_blk is capped small
    # in the wrapper so the unroll stays modest.
    for b in range(b_blk):
        acc = jnp.dot(wa, xr_ref[b], preferred_element_type=jnp.float32)
        acc = acc + jnp.dot(wb, xi_ref[b], preferred_element_type=jnp.float32)
        acc = acc + bf                                   # fused bias
        # Prefix / 8-aligned-offset sublane slices (c_out_pad % 8 == 0).
        or_ref[b] = acc[:c_out, :].astype(or_ref.dtype)
        oi_ref[b] = acc[c_out_pad:c_out_pad + c_out, :].astype(oi_ref.dtype)


def _round_up(n, m):
    return -(-n // m) * m


def _pick_tiles(B, C_in, C_out, L, tile_l, b_blk):
    """Heuristic tile sizing: big lane-dense L tiles + batch blocking so each
    grid step moves ~>=0.5-1 MiB (amortizes the fixed per-step overhead)."""
    if tile_l is None:
        if L % 128 == 0:
            tile_l = 128
            for cand in (4096, 2048, 1024, 512, 256, 128):
                if cand <= L and L % cand == 0:
                    tile_l = cand
                    break
        else:
            # Full-L block for small L; otherwise masked boundary block.
            tile_l = L if L <= 4096 else 4096
    if b_blk is None:
        # f32 streams per batch row per tile: x_r + x_i + o_r + o_i.
        per_b_bytes = 4 * tile_l * 2 * (C_in + C_out)
        want = max(1, (1 << 20) // per_b_bytes)        # target ~1 MiB / step
        want = min(want, 16, B)                        # cap in-kernel unroll
        b_blk = max(d for d in range(1, B + 1) if B % d == 0 and d <= want)
        # Keep a few grid steps alive (pipelining / v7x megacore) unless that
        # would drop per-step traffic below ~512 KiB.
        l_steps = -(-L // tile_l)
        while (b_blk > 1 and (B // b_blk) * l_steps < 4
               and (b_blk // 2) * per_b_bytes >= (512 << 10)):
            cand = b_blk // 2
            while cand > 1 and B % cand != 0:
                cand -= 1
            b_blk = cand
    return tile_l, b_blk


def cconv_pallas(x_r, x_i, w_r, w_i, b_r, b_i, *, tile_l=None, b_blk=None):
    """Complex 1x1 Conv1d, NCL layout throughout.

    x_r, x_i : (B, C_in, L)          float32 (PyTorch NCL)
    w_r, w_i : (C_out, C_in, 1) or (C_out, C_in)   Conv1d ks=1 weights
    b_r, b_i : (C_out,)
    returns  : (out_r, out_i), each (B, C_out, L)
    """
    B, C_in, L = x_r.shape
    if w_r.ndim == 3:
        w_r = w_r[:, :, 0]
        w_i = w_i[:, :, 0]
    C_out = w_r.shape[0]
    dtype = x_r.dtype

    # Pad C_out to a multiple of 8 so the accumulator split is sublane-aligned.
    C_out_pad = _round_up(C_out, 8)
    pad = C_out_pad - C_out
    if pad:
        zw = jnp.zeros((pad, C_in), w_r.dtype)
        w_rp = jnp.concatenate([w_r, zw], axis=0)
        w_ip = jnp.concatenate([w_i, zw], axis=0)
        zb = jnp.zeros((pad,), b_r.dtype)
        b_rp = jnp.concatenate([b_r, zb])
        b_ip = jnp.concatenate([b_i, zb])
    else:
        w_rp, w_ip, b_rp, b_ip = w_r, w_i, b_r, b_i

    # Fused block-complex weights / bias (tiny, built once per trace).
    wa = jnp.concatenate([w_rp, w_ip], axis=0)               # (2*C_out_pad, C_in)
    wb = jnp.concatenate([-w_ip, w_rp], axis=0)              # (2*C_out_pad, C_in)
    bf = jnp.concatenate([b_rp - b_ip, b_rp + b_ip]).reshape(2 * C_out_pad, 1)

    tile_l, b_blk = _pick_tiles(B, C_in, C_out, L, tile_l, b_blk)
    grid = (pl.cdiv(B, b_blk), pl.cdiv(L, tile_l))

    x_spec = pl.BlockSpec((b_blk, C_in, tile_l), lambda b, l: (b, 0, l))
    o_spec = pl.BlockSpec((b_blk, C_out, tile_l), lambda b, l: (b, 0, l))
    w_spec = pl.BlockSpec((2 * C_out_pad, C_in), lambda b, l: (0, 0))    # resident
    b_spec = pl.BlockSpec((2 * C_out_pad, 1), lambda b, l: (0, 0))       # resident

    flops = 8 * B * L * C_in * C_out
    bytes_accessed = 4 * (2 * B * C_in * L + 2 * B * C_out * L
                          + 2 * (2 * C_out_pad * C_in) + 2 * C_out_pad)

    out_r, out_i = pl.pallas_call(
        _cconv_kernel,
        out_shape=(
            jax.ShapeDtypeStruct((B, C_out, L), dtype),
            jax.ShapeDtypeStruct((B, C_out, L), dtype),
        ),
        grid=grid,
        in_specs=[x_spec, x_spec, w_spec, w_spec, b_spec],
        out_specs=(o_spec, o_spec),
        compiler_params=pltpu.CompilerParams(
            dimension_semantics=("parallel", "parallel")),
        cost_estimate=pl.CostEstimate(
            flops=flops, transcendentals=0, bytes_accessed=bytes_accessed),
    )(x_r, x_i, wa, wb, bf)
    return out_r, out_i


def _reference(x_r, x_i, w_r, w_i, b_r, b_i):
    """Pure-JAX reference mirroring the PyTorch forward (ks=1 Conv1d)."""
    def conv1(x, w, b):  # x:(B,Cin,L) w:(Cout,Cin,1) b:(Cout,)
        return jnp.einsum('bcl,oc->bol', x, w[:, :, 0]) + b[None, :, None]
    x_rr = conv1(x_r, w_r, b_r)
    x_ri = conv1(x_r, w_i, b_i)
    x_ir = conv1(x_i, w_r, b_r)
    x_ii = conv1(x_i, w_i, b_i)
    return x_rr - x_ii, x_ri + x_ir


def _make_inputs(key, B, C_in, C_out, L):
    k = jax.random.split(key, 6)
    x_r = jax.random.normal(k[0], (B, C_in, L), dtype=jnp.float32)
    x_i = jax.random.normal(k[1], (B, C_in, L), dtype=jnp.float32)
    w_r = jax.random.normal(k[2], (C_out, C_in, 1), dtype=jnp.float32) * 0.1
    w_i = jax.random.normal(k[3], (C_out, C_in, 1), dtype=jnp.float32) * 0.1
    b_r = jax.random.normal(k[4], (C_out,), dtype=jnp.float32) * 0.1
    b_i = jax.random.normal(k[5], (C_out,), dtype=jnp.float32) * 0.1
    return x_r, x_i, w_r, w_i, b_r, b_i


if __name__ == "__main__":
    # Case 1: aligned channels, explicit small tiles -> grid (2, 4) exercises
    # the batch-blocked, L-tiled, double-buffered pipeline.
    B, C_in, C_out, L = 4, 4, 8, 512
    args1 = _make_inputs(jax.random.PRNGKey(0), B, C_in, C_out, L)
    fn1 = jax.jit(functools.partial(cconv_pallas, tile_l=128, b_blk=2))
    out_r, out_i = fn1(*args1)
    jax.block_until_ready((out_r, out_i))
    ref_r, ref_i = _reference(*args1)
    assert out_r.shape == (B, C_out, L) and out_i.shape == (B, C_out, L)
    assert jnp.allclose(out_r, ref_r, atol=1e-5, rtol=1e-5)
    assert jnp.allclose(out_i, ref_i, atol=1e-5, rtol=1e-5)

    # Case 2: auto tiling; C_out not a multiple of 8 (exercises the padded
    # accumulator split) and L not a multiple of 128 (full-L lane block).
    B2, C_in2, C_out2, L2 = 3, 4, 6, 192
    args2 = _make_inputs(jax.random.PRNGKey(1), B2, C_in2, C_out2, L2)
    out_r2, out_i2 = jax.jit(cconv_pallas)(*args2)
    jax.block_until_ready((out_r2, out_i2))
    ref_r2, ref_i2 = _reference(*args2)
    assert out_r2.shape == (B2, C_out2, L2) and out_i2.shape == (B2, C_out2, L2)
    assert jnp.allclose(out_r2, ref_r2, atol=1e-5, rtol=1e-5)
    assert jnp.allclose(out_i2, ref_i2, atol=1e-5, rtol=1e-5)

    print("KERNEL_OK")
</pallas_src>

<mosaic_0001>
module attributes {stable_mosaic.version = 11 : i64} {
  func.func @_cconv_kernel(%arg0: i32, %arg1: i32, %arg2: memref<2x4x128xf32, #tpu.memory_space<vmem>>, %arg3: memref<2x4x128xf32, #tpu.memory_space<vmem>>, %arg4: memref<16x4xf32, #tpu.memory_space<vmem>>, %arg5: memref<16x4xf32, #tpu.memory_space<vmem>>, %arg6: memref<16x1xf32, #tpu.memory_space<vmem>>, %arg7: memref<2x8x128xf32, #tpu.memory_space<vmem>>, %arg8: memref<2x8x128xf32, #tpu.memory_space<vmem>>) attributes {dimension_semantics = [#tpu.dimension_semantics<parallel>, #tpu.dimension_semantics<parallel>], iteration_bounds = array<i64: 2, 4>, scalar_prefetch = 0 : i64, scratch_operands = 0 : i64, tpu.core_type = #tpu.core_type<tc>, window_params = [{transform_indices = @transform_0, window_bounds = array<i64: 2, 4, 128>}, {transform_indices = @transform_1, window_bounds = array<i64: 2, 4, 128>}, {pipeline_mode = #tpu.pipeline_mode<synchronous>, transform_indices = @transform_2, window_bounds = array<i64: 16, 4>}, {pipeline_mode = #tpu.pipeline_mode<synchronous>, transform_indices = @transform_3, window_bounds = array<i64: 16, 4>}, {pipeline_mode = #tpu.pipeline_mode<synchronous>, transform_indices = @transform_4, window_bounds = array<i64: 16, 1>}, {transform_indices = @transform_5, window_bounds = array<i64: 2, 8, 128>}, {transform_indices = @transform_6, window_bounds = array<i64: 2, 8, 128>}]} {
    %c0 = arith.constant 0 : index
    %c0_0 = arith.constant 0 : index
    %0 = vector.load %arg4[%c0, %c0_0] : memref<16x4xf32, #tpu.memory_space<vmem>>, vector<16x4xf32>
    %c0_1 = arith.constant 0 : index
    %c0_2 = arith.constant 0 : index
    %1 = vector.load %arg5[%c0_1, %c0_2] : memref<16x4xf32, #tpu.memory_space<vmem>>, vector<16x4xf32>
    %c0_3 = arith.constant 0 : index
    %c0_4 = arith.constant 0 : index
    %2 = vector.load %arg6[%c0_3, %c0_4] : memref<16x1xf32, #tpu.memory_space<vmem>>, vector<16x1xf32>
    %c0_5 = arith.constant 0 : index
    %c0_6 = arith.constant 0 : index
    %c0_7 = arith.constant 0 : index
    %3 = vector.load %arg2[%c0_5, %c0_6, %c0_7] : memref<2x4x128xf32, #tpu.memory_space<vmem>>, vector<1x4x128xf32>
    %4 = vector.shape_cast %3 : vector<1x4x128xf32> to vector<4x128xf32>
    %cst = arith.constant dense<0.000000e+00> : vector<16x128xf32>
    %5 = tpu.matmul %0, %4, %cst {dimension_numbers = #tpu.dot_dimension_numbers<[1], [0], [0], [1], [0, 0, 1, 1], [], []>} : vector<16x4xf32>, vector<4x128xf32>, vector<16x128xf32> -> vector<16x128xf32>
    %c0_8 = arith.constant 0 : index
    %c0_9 = arith.constant 0 : index
    %c0_10 = arith.constant 0 : index
    %6 = vector.load %arg3[%c0_8, %c0_9, %c0_10] : memref<2x4x128xf32, #tpu.memory_space<vmem>>, vector<1x4x128xf32>
    %7 = vector.shape_cast %6 : vector<1x4x128xf32> to vector<4x128xf32>
    %cst_11 = arith.constant dense<0.000000e+00> : vector<16x128xf32>
    %8 = tpu.matmul %1, %7, %cst_11 {dimension_numbers = #tpu.dot_dimension_numbers<[1], [0], [0], [1], [0, 0, 1, 1], [], []>} : vector<16x4xf32>, vector<4x128xf32>, vector<16x128xf32> -> vector<16x128xf32>
    %9 = arith.addf %5, %8 : vector<16x128xf32>
    %10 = vector.broadcast %2 : vector<16x1xf32> to vector<16x128xf32>
    %11 = arith.addf %9, %10 : vector<16x128xf32>
    %12 = vector.extract_strided_slice %11 {offsets = [0, 0], sizes = [8, 128], strides = [1, 1]} : vector<16x128xf32> to vector<8x128xf32>
    %c0_12 = arith.constant 0 : index
    %c0_13 = arith.constant 0 : index
    %c0_14 = arith.constant 0 : index
    %13 = vector.load %arg7[%c0_12, %c0_13, %c0_14] : memref<2x8x128xf32, #tpu.memory_space<vmem>>, vector<1x8x128xf32>
    %14 = vector.shape_cast %13 : vector<1x8x128xf32> to vector<8x128xf32>
    %15 = vector.shape_cast %12 : vector<8x128xf32> to vector<1x8x128xf32>
    tpu.vector_store %arg7[%c0_12, %c0_13, %c0_14], %15 {strides = array<i32>} : memref<2x8x128xf32, #tpu.memory_space<vmem>>, vector<1x8x128xf32>,
    %16 = vector.extract_strided_slice %11 {offsets = [8, 0], sizes = [8, 128], strides = [1, 1]} : vector<16x128xf32> to vector<8x128xf32>
    %c0_15 = arith.constant 0 : index
    %c0_16 = arith.constant 0 : index
    %c0_17 = arith.constant 0 : index
    %17 = vector.load %arg8[%c0_15, %c0_16, %c0_17] : memref<2x8x128xf32, #tpu.memory_space<vmem>>, vector<1x8x128xf32>
    %18 = vector.shape_cast %17 : vector<1x8x128xf32> to vector<8x128xf32>
    %19 = vector.shape_cast %16 : vector<8x128xf32> to vector<1x8x128xf32>
    tpu.vector_store %arg8[%c0_15, %c0_16, %c0_17], %19 {strides = array<i32>} : memref<2x8x128xf32, #tpu.memory_space<vmem>>, vector<1x8x128xf32>,
    %c1 = arith.constant 1 : index
    %c0_18 = arith.constant 0 : index
    %c0_19 = arith.constant 0 : index
    %20 = vector.load %arg2[%c1, %c0_18, %c0_19] : memref<2x4x128xf32, #tpu.memory_space<vmem>>, vector<1x4x128xf32>
    %21 = vector.shape_cast %20 : vector<1x4x128xf32> to vector<4x128xf32>
    %cst_20 = arith.constant dense<0.000000e+00> : vector<16x128xf32>
    %22 = tpu.matmul %0, %21, %cst_20 {dimension_numbers = #tpu.dot_dimension_numbers<[1], [0], [0], [1], [0, 0, 1, 1], [], []>} : vector<16x4xf32>, vector<4x128xf32>, vector<16x128xf32> -> vector<16x128xf32>
    %c1_21 = arith.constant 1 : index
    %c0_22 = arith.constant 0 : index
    %c0_23 = arith.constant 0 : index
    %23 = vector.load %arg3[%c1_21, %c0_22, %c0_23] : memref<2x4x128xf32, #tpu.memory_space<vmem>>, vector<1x4x128xf32>
    %24 = vector.shape_cast %23 : vector<1x4x128xf32> to vector<4x128xf32>
    %cst_24 = arith.constant dense<0.000000e+00> : vector<16x128xf32>
    %25 = tpu.matmul %1, %24, %cst_24 {dimension_numbers = #tpu.dot_dimension_numbers<[1], [0], [0], [1], [0, 0, 1, 1], [], []>} : vector<16x4xf32>, vector<4x128xf32>, vector<16x128xf32> -> vector<16x128xf32>
    %26 = arith.addf %22, %25 : vector<16x128xf32>
    %27 = vector.broadcast %2 : vector<16x1xf32> to vector<16x128xf32>
    %28 = arith.addf %26, %27 : vector<16x128xf32>
    %29 = vector.extract_strided_slice %28 {offsets = [0, 0], sizes = [8, 128], strides = [1, 1]} : vector<16x128xf32> to vector<8x128xf32>
    %c1_25 = arith.constant 1 : index
    %c0_26 = arith.constant 0 : index
    %c0_27 = arith.constant 0 : index
    %30 = vector.load %arg7[%c1_25, %c0_26, %c0_27] : memref<2x8x128xf32, #tpu.memory_space<vmem>>, vector<1x8x128xf32>
    %31 = vector.shape_cast %30 : vector<1x8x128xf32> to vector<8x128xf32>
    %32 = vector.shape_cast %29 : vector<8x128xf32> to vector<1x8x128xf32>
    tpu.vector_store %arg7[%c1_25, %c0_26, %c0_27], %32 {strides = array<i32>} : memref<2x8x128xf32, #tpu.memory_space<vmem>>, vector<1x8x128xf32>,
    %33 = vector.extract_strided_slice %28 {offsets = [8, 0], sizes = [8, 128], strides = [1, 1]} : vector<16x128xf32> to vector<8x128xf32>
    %c1_28 = arith.constant 1 : index
    %c0_29 = arith.constant 0 : index
    %c0_30 = arith.constant 0 : index
    %34 = vector.load %arg8[%c1_28, %c0_29, %c0_30] : memref<2x8x128xf32, #tpu.memory_space<vmem>>, vector<1x8x128xf32>
    %35 = vector.shape_cast %34 : vector<1x8x128xf32> to vector<8x128xf32>
    %36 = vector.shape_cast %33 : vector<8x128xf32> to vector<1x8x128xf32>
    tpu.vector_store %arg8[%c1_28, %c0_29, %c0_30], %36 {strides = array<i32>} : memref<2x8x128xf32, #tpu.memory_space<vmem>>, vector<1x8x128xf32>,
    return
  }
  func.func @transform_0(%arg0: i32, %arg1: i32) -> (i32, i32, i32) {
    %c0_i32 = arith.constant 0 : i32
    %c0_i32_0 = arith.constant 0 : i32
    return %arg0, %c0_i32, %arg1 : i32, i32, i32
  }
  func.func @transform_1(%arg0: i32, %arg1: i32) -> (i32, i32, i32) {
    %c0_i32 = arith.constant 0 : i32
    %c0_i32_0 = arith.constant 0 : i32
    return %arg0, %c0_i32, %arg1 : i32, i32, i32
  }
  func.func @transform_2(%arg0: i32, %arg1: i32) -> (i32, i32) {
    %c0_i32 = arith.constant 0 : i32
    %c0_i32_0 = arith.constant 0 : i32
    %c0_i32_1 = arith.constant 0 : i32
    return %c0_i32, %c0_i32_0 : i32, i32
  }
  func.func @transform_3(%arg0: i32, %arg1: i32) -> (i32, i32) {
    %c0_i32 = arith.constant 0 : i32
    %c0_i32_0 = arith.constant 0 : i32
    %c0_i32_1 = arith.constant 0 : i32
    return %c0_i32, %c0_i32_0 : i32, i32
  }
  func.func @transform_4(%arg0: i32, %arg1: i32) -> (i32, i32) {
    %c0_i32 = arith.constant 0 : i32
    %c0_i32_0 = arith.constant 0 : i32
    %c0_i32_1 = arith.constant 0 : i32
    return %c0_i32, %c0_i32_0 : i32, i32
  }
  func.func @transform_5(%arg0: i32, %arg1: i32) -> (i32, i32, i32) {
    %c0_i32 = arith.constant 0 : i32
    %c0_i32_0 = arith.constant 0 : i32
    return %arg0, %c0_i32, %arg1 : i32, i32, i32
  }
  func.func @transform_6(%arg0: i32, %arg1: i32) -> (i32, i32, i32) {
    %c0_i32 = arith.constant 0 : i32
    %c0_i32_0 = arith.constant 0 : i32
    return %arg0, %c0_i32, %arg1 : i32, i32, i32
  }
}

</mosaic_0001>

<llo_original>
// kernel: neg.1
$region0: #{neg.1}
  #allocation0 [shape = 's32[1]{0}', space=sflag, size = 0x4, scoped, tag = 'scoped memory for neg.1']
  %s0 = inlined_call_operand.vmem [shape: f32[8,4], index: 0, kind: input, shape index: {}]
  %s1 = inlined_call_operand.vmem [shape: f32[8,4], index: 1, kind: output, shape index: {}]
  %v2 = vld [vmem:[%s0] sm:$0xf]
  %3 = xla_tuple %v2
  %4 = xla_tuple %3
  %v5 = vxor.u32 %v2, 2147483648
  %6 = xla_tuple %v5
  %7 = vst [vmem:[%s1] sm:$0xf] %v5

// kernel: cconv_pallas.1
$region0: #{cconv_pallas.1}
  #allocation0 [shape = 'u32[]', space=smem, size = 0x4, offset = 0x4, fixed_abs, tag = 'smem constant byte address 0x4 - core index']
  #allocation1 [shape = 'u32[144,128]{1,0:T(1,128)}', space=vmem, size = 0x12000, scoped, tag = 'internal scratch']
  %s0 = inlined_call_operand.vmem [shape: f32[4,4,512], index: 0, kind: input, shape index: {}]
  %s1 = inlined_call_operand.hbm [shape: f32[4,4,512], index: 1, kind: input, shape index: {}]
  %s2 = inlined_call_operand.vmem [shape: f32[16,4], index: 2, kind: input, shape index: {}]
  %s3 = inlined_call_operand.vmem [shape: f32[16,4], index: 3, kind: input, shape index: {}]
  %s4 = inlined_call_operand.vmem [shape: f32[16,1], index: 4, kind: input, shape index: {}]
  %s5 = inlined_call_operand.hbm [shape: f32[4,8,512], index: 5, kind: output, shape index: {0}]
  %s6 = inlined_call_operand.hbm [shape: f32[4,8,512], index: 6, kind: output, shape index: {1}]
  %7 = xla_tuple %s5, %s6
  %s8 = sld [smem:[#allocation0]]
  $region106: #{cconv_pallas.1} parent=0
    _
  %s10 = ssub.s32 1, %s8
  %s11 = scalar_select 0, %s10, %s8
  $region1: #{cconv_pallas.1} parent=0
    #allocation2 [shape = 'u8[8192]{0}', space=vmem, size = 0x2000, scoped, tag = 'input window, operand 0']
    #allocation3 [shape = 'u8[8192]{0}', space=vmem, size = 0x2000, scoped, tag = 'input window, operand 1']
    #allocation4 [shape = 's32[2]{0}', space=sflag, size = 0x8, scoped, tag = 'scoped memory for cconv_pallas.1']
    #allocation5 [shape = 's32[2]{0}', space=sflag, size = 0x8, scoped, tag = 'scoped memory for cconv_pallas.1']
    #allocation6 [shape = 'u8[16384]{0}', space=vmem, size = 0x4000, scoped, tag = 'output window, operand 0']
    #allocation7 [shape = 'u8[16384]{0}', space=vmem, size = 0x4000, scoped, tag = 'output window, operand 1']
    #allocation8 [shape = 's32[2]{0}', space=sflag, size = 0x8, scoped, tag = 'scoped memory for cconv_pallas.1']
    %12 = vsyncpa [#allocation4], 0
    %s13 = scalar_lea.sflag [#allocation4], 1
    %14 = vsyncpa %s13, 0
    %15 = vsyncpa [#allocation5], 0
    %s16 = scalar_lea.sflag [#allocation5], 1
    %17 = vsyncpa %s16, 0
    %18 = vsyncpa [#allocation8], 0
    %s19 = scalar_lea.sflag [#allocation8], 1
    %20 = vsyncpa %s19, 0
    loop: start=0, step=1, limit=10
    $region2: #{cconv_pallas.1} parent=1 // loop_pre_header
      _
    $region3: #{cconv_pallas.1} parent=1 // loop_header
      %s22 = sphi 0, %s26
      %p23 = scmp.ge.s32.totalorder %s22, 10
      %s29 = sphi 0, %s41
      %s30 = sphi 0, %s37
      %s31 = sphi 0, %s29
      %s32 = sphi 0, %s30
      %s33 = sphi 0, %s31
      %s34 = sphi 0, %s32
      %s46 = sphi 0, %s48
      %s49 = sphi 0, %s46
      %s50 = sphi 0, %s49
      %s66 = sphi 0, %s50
      %s74 = sphi 0, %s76
      %s77 = sphi 0, %s74
      %s78 = sphi 0, %s77
      %s94 = sphi 0, %s78
      %s98 = sphi 0, %s98
      %s100 = sphi 0, %s98
      %s101 = sphi 0, %s100
      %s115 = sphi 0, %s101
      %s119 = sphi 0, %s119
      %s121 = sphi 0, %s119
      %s122 = sphi 0, %s121
      %s136 = sphi 0, %s122
      %s140 = sphi 0, %s140
      %s142 = sphi 0, %s140
      %s143 = sphi 0, %s142
      %s157 = sphi 0, %s143
      %s165 = sphi 0, %s167
      %s168 = sphi 0, %s165
      %s169 = sphi 0, %s168
      %s185 = sphi 0, %s169
      %s193 = sphi 0, %s195
      %s196 = sphi 0, %s193
      %s197 = sphi 0, %s196
      %s213 = sphi 0, %s197
    $region4: #{cconv_pallas.1} parent=1 // loop_header_branch
      %25 = sbr.rel (%p23) target = $region8
    $region5: #{cconv_pallas.1} parent=1 // loop_body
      %s27 = ssub.s32 %s22, 1
      %s28 = ssub.s32 %s22, 2
      %s35 = sadd.s32 1, %s30
      %p36 = scmp.ge.s32.totalorder %s35, 4
      %s37 = scalar_select %p36, 0, %s35
      %s38 = sadd.s32 1, %s29
      %s39 = scalar_select %p36, %s38, %s29
      %p40 = scmp.ge.s32.totalorder %s39, 2
      %s41 = scalar_select %p40, 0, %s39
      %s42 = ssub.s32 %s29, %s41
      %s43 = ssub.s32 %s30, %s37
      %s44 = sor.u32 %s42, %s43
      %p45 = scmp.eq.s32.totalorder %s44, 0
      %s47 = sadd.s32 %s46, 1
      %s48 = scalar_select %p45, %s46, %s47
      %p51 = pneg %p45
      %p52 = scmp.eq.s32.totalorder %s22, 7
      %p53 = por %p51, %p52
      %p54 = scmp.ne.s32.totalorder %s46, %s49
      %p55 = scmp.eq.s32.totalorder %s22, 0
      %p56 = por %p54, %p55
      %p57 = scmp.ne.s32.totalorder %s46, %s49
      %p58 = scmp.eq.s32.totalorder %s27, 7
      %p59 = por %p57, %p58
      %p60 = scmp.ne.s32.totalorder %s49, %s50
      %p61 = scmp.eq.s32.totalorder %s27, 0
      %p62 = por %p60, %p61
      %p63 = scmp.ne.s32.totalorder %s49, %s50
      %p64 = scmp.eq.s32.totalorder %s28, 7
      %p65 = por %p63, %p64
      %p67 = scmp.ne.s32.totalorder %s50, %s66
      %p68 = scmp.eq.s32.totalorder %s28, 0
      %p69 = por %p67, %p68
      %s70 = ssub.s32 %s29, %s41
      %s71 = ssub.s32 %s30, %s37
      %s72 = sor.u32 %s70, %s71
      %p73 = scmp.eq.s32.totalorder %s72, 0
      %s75 = sadd.s32 %s74, 1
      %s76 = scalar_select %p73, %s74, %s75
      %p79 = pneg %p73
      %p80 = scmp.eq.s32.totalorder %s22, 7
      %p81 = por %p79, %p80
      %p82 = scmp.ne.s32.totalorder %s74, %s77
      %p83 = scmp.eq.s32.totalorder %s22, 0
      %p84 = por %p82, %p83
      %p85 = scmp.ne.s32.totalorder %s74, %s77
      %p86 = scmp.eq.s32.totalorder %s27, 7
      %p87 = por %p85, %p86
      %p88 = scmp.ne.s32.totalorder %s77, %s78
      %p89 = scmp.eq.s32.totalorder %s27, 0
      %p90 = por %p88, %p89
      %p91 = scmp.ne.s32.totalorder %s77, %s78
      %p92 = scmp.eq.s32.totalorder %s28, 7
      %p93 = por %p91, %p92
      %p95 = scmp.ne.s32.totalorder %s78, %s94
      %p96 = scmp.eq.s32.totalorder %s28, 0
      %p97 = por %p95, %p96
      %s99 = sadd.s32 %s98, 1
      %p102 = scmp.eq.s32.totalorder %s22, 7
      %p103 = scmp.ne.s32.totalorder %s98, %s100
      %p104 = scmp.eq.s32.totalorder %s22, 0
      %p105 = por %p103, %p104
      %p106 = scmp.ne.s32.totalorder %s98, %s100
      %p107 = scmp.eq.s32.totalorder %s27, 7
      %p108 = por %p106, %p107
      %p109 = scmp.ne.s32.totalorder %s100, %s101
      %p110 = scmp.eq.s32.totalorder %s27, 0
      %p111 = por %p109, %p110
      %p112 = scmp.ne.s32.totalorder %s100, %s101
      %p113 = scmp.eq.s32.totalorder %s28, 7
      %p114 = por %p112, %p113
      %p116 = scmp.ne.s32.totalorder %s101, %s115
      %p117 = scmp.eq.s32.totalorder %s28, 0
      %p118 = por %p116, %p117
      %s120 = sadd.s32 %s119, 1
      %p123 = scmp.eq.s32.totalorder %s22, 7
      %p124 = scmp.ne.s32.totalorder %s119, %s121
      %p125 = scmp.eq.s32.totalorder %s22, 0
      %p126 = por %p124, %p125
      %p127 = scmp.ne.s32.totalorder %s119, %s121
      %p128 = scmp.eq.s32.totalorder %s27, 7
      %p129 = por %p127, %p128
      %p130 = scmp.ne.s32.totalorder %s121, %s122
      %p131 = scmp.eq.s32.totalorder %s27, 0
      %p132 = por %p130, %p131
      %p133 = scmp.ne.s32.totalorder %s121, %s122
      %p134 = scmp.eq.s32.totalorder %s28, 7
      %p135 = por %p133, %p134
      %p137 = scmp.ne.s32.totalorder %s122, %s136
      %p138 = scmp.eq.s32.totalorder %s28, 0
      %p139 = por %p137, %p138
      %s141 = sadd.s32 %s140, 1
      %p144 = scmp.eq.s32.totalorder %s22, 7
      %p145 = scmp.ne.s32.totalorder %s140, %s142
      %p146 = scmp.eq.s32.totalorder %s22, 0
      %p147 = por %p145, %p146
      %p148 = scmp.ne.s32.totalorder %s140, %s142
      %p149 = scmp.eq.s32.totalorder %s27, 7
      %p150 = por %p148, %p149
      %p151 = scmp.ne.s32.totalorder %s142, %s143
      %p152 = scmp.eq.s32.totalorder %s27, 0
      %p153 = por %p151, %p152
      %p154 = scmp.ne.s32.totalorder %s142, %s143
      %p155 = scmp.eq.s32.totalorder %s28, 7
      %p156 = por %p154, %p155
      %p158 = scmp.ne.s32.totalorder %s143, %s157
      %p159 = scmp.eq.s32.totalorder %s28, 0
      %p160 = por %p158, %p159
      %s161 = ssub.s32 %s29, %s41
      %s162 = ssub.s32 %s30, %s37
      %s163 = sor.u32 %s161, %s162
      %p164 = scmp.eq.s32.totalorder %s163, 0
      %s166 = sadd.s32 %s165, 1
      %s167 = scalar_select %p164, %s165, %s166
      %p170 = pneg %p164
      %p171 = scmp.eq.s32.totalorder %s22, 7
      %p172 = por %p170, %p171
      %p173 = scmp.ne.s32.totalorder %s165, %s168
      %p174 = scmp.eq.s32.totalorder %s22, 0
      %p175 = por %p173, %p174
      %p176 = scmp.ne.s32.totalorder %s165, %s168
      %p177 = scmp.eq.s32.totalorder %s27, 7
      %p178 = por %p176, %p177
      %p179 = scmp.ne.s32.totalorder %s168, %s169
      %p180 = scmp.eq.s32.totalorder %s27, 0
      %p181 = por %p179, %p180
      %p182 = scmp.ne.s32.totalorder %s168, %s169
      %p183 = scmp.eq.s32.totalorder %s28, 7
      %p184 = por %p182, %p183
      %p186 = scmp.ne.s32.totalorder %s169, %s185
      %p187 = scmp.eq.s32.totalorder %s28, 0
      %p188 = por %p186, %p187
      %s189 = ssub.s32 %s29, %s41
      %s190 = ssub.s32 %s30, %s37
      %s191 = sor.u32 %s189, %s190
      %p192 = scmp.eq.s32.totalorder %s191, 0
      %s194 = sadd.s32 %s193, 1
      %s195 = scalar_select %p192, %s193, %s194
      %p198 = pneg %p192
      %p199 = scmp.eq.s32.totalorder %s22, 7
      %p200 = por %p198, %p199
      %p201 = scmp.ne.s32.totalorder %s193, %s196
      %p202 = scmp.eq.s32.totalorder %s22, 0
      %p203 = por %p201, %p202
      %p204 = scmp.ne.s32.totalorder %s193, %s196
      %p205 = scmp.eq.s32.totalorder %s27, 7
      %p206 = por %p204, %p205
      %p207 = scmp.ne.s32.totalorder %s196, %s197
      %p208 = scmp.eq.s32.totalorder %s27, 0
      %p209 = por %p207, %p208
      %p210 = scmp.ne.s32.totalorder %s196, %s197
      %p211 = scmp.eq.s32.totalorder %s28, 7
      %p212 = por %p210, %p211
      %p214 = scmp.ne.s32.totalorder %s197, %s213
      %p215 = scmp.eq.s32.totalorder %s28, 0
      %p216 = por %p214, %p215
      %p217 = scmp.le.s32.totalorder 1, %s22
      %p218 = scmp.lt.s32.totalorder %s22, 9
      %p219 = pnand %p217, %p218
      %p220 = pneg %p219
      // Predicated region
      $region9: #{cconv_pallas.1} parent=5 // pred_check
        _
      $region10: #{cconv_pallas.1} parent=5 // pred_check_branch
        %222 = sbr.rel (%p219) target = $region12
      $region11: #{cconv_pallas.1} parent=5 // pred_region
        %s223 = ssub.s32 %s22, 1
        // Predicated region
        $region13: #{cconv_pallas.1} parent=11 // pred_check
          %p224 = pneg %p111
        $region14: #{cconv_pallas.1} parent=11 // pred_check_branch
          %226 = sbr.rel (%p224) target = $region16
        $region15: #{cconv_pallas.1} parent=11 // pred_region
          _
        $region16: #{cconv_pallas.1} parent=11 // pred_fallthru
          _
        // Predicated region
        $region17: #{cconv_pallas.1} parent=11 // pred_check
          %p227 = pneg %p132
        $region18: #{cconv_pallas.1} parent=11 // pred_check_branch
          %229 = sbr.rel (%p227) target = $region20
        $region19: #{cconv_pallas.1} parent=11 // pred_region
          _
        $region20: #{cconv_pallas.1} parent=11 // pred_fallthru
          _
        // Predicated region
        $region21: #{cconv_pallas.1} parent=11 // pred_check
          %p230 = pneg %p153
        $region22: #{cconv_pallas.1} parent=11 // pred_check_branch
          %232 = sbr.rel (%p230) target = $region24
        $region23: #{cconv_pallas.1} parent=11 // pred_region
          _
        $region24: #{cconv_pallas.1} parent=11 // pred_fallthru
          _
      $region12: #{cconv_pallas.1} parent=5 // pred_fallthru
        _
      %p233 = scmp.lt.s32.totalorder %s22, 8
      // Predicated region
      $region25: #{cconv_pallas.1} parent=5 // pred_check
        %p234 = pneg %p233
      $region26: #{cconv_pallas.1} parent=5 // pred_check_branch
        %236 = sbr.rel (%p234) target = $region28
      $region27: #{cconv_pallas.1} parent=5 // pred_region
        // Predicated region
        $region29: #{cconv_pallas.1} parent=27 // pred_check
          %p237 = pneg %p56
        $region30: #{cconv_pallas.1} parent=27 // pred_check_branch
          %239 = sbr.rel (%p237) target = $region32
        $region31: #{cconv_pallas.1} parent=27 // pred_region
          %s240 = sand.u32 %s46, 1
          %s241 = sand.u32 %s46, 1
          %s242 = smul.addr %s241, 8
          %s243 = scalar_lea.vmem [#allocation2], %s242
          %s244 = smul.u32 2, %s29
          %s245 = smul.addr %s244, 4
          %s246 = sadd.s32 %s30, %s245
          %s247 = smul.addr %s246, 4
          %s248 = scalar_lea.vmem %s0, %s247
          // Predicated region
          $region33: #{cconv_pallas.1} parent=31 // pred_check
            _
          $region34: #{cconv_pallas.1} parent=31 // pred_check_branch
            %250 = sbr.rel (0) target = $region36
          $region35: #{cconv_pallas.1} parent=31 // pred_region
            // Predicated region
            $region37: #{cconv_pallas.1} parent=35 // pred_check
              _
            $region38: #{cconv_pallas.1} parent=35 // pred_check_branch
              %252 = sbr.rel target = $region40
            $region39: #{cconv_pallas.1} parent=35 // pred_region
              // Predicated region
              $region52: #{cconv_pallas.1} parent=39 // pred_check
                _
              $region53: #{cconv_pallas.1} parent=39 // pred_check_branch
                %269 = sbr.rel (0) target = $region55
              $region54: #{cconv_pallas.1} parent=39 // pred_region
                loop: start=0, step=1, limit=1
                $region56: #{cconv_pallas.1} parent=54 // loop_pre_header
                  _
                $region57: #{cconv_pallas.1} parent=54 // loop_header
                  %s271 = sphi 0, %s275
                  %p272 = scmp.ge.s32.totalorder %s271, 1
                  %s276 = sphi %s248, %s248
                  %s277 = sphi %s243, %s243
                $region58: #{cconv_pallas.1} parent=54 // loop_header_branch
                  %274 = sbr.rel (%p272) target = $region62
                $region59: #{cconv_pallas.1} parent=54 // loop_body
                  _
                $region60: #{cconv_pallas.1} parent=54 // loop_footer
                  %s275 = sadd.s32 1, %s271
                $region61: #{cconv_pallas.1} parent=54 // loop_footer_branch
                  %270 = sbr.rel target = $region57
                $region62: #{cconv_pallas.1} parent=54 // loop_exit
                  _
                loop: start=0, step=1, limit=1
                $region63: #{cconv_pallas.1} parent=54 // loop_pre_header
                  _
                $region64: #{cconv_pallas.1} parent=54 // loop_header
                  %s280 = sphi 0, %s284
                  %p281 = scmp.ge.s32.totalorder %s280, 1
                  %s285 = sphi %s248, %s248
                  %s286 = sphi %s243, %s243
                $region65: #{cconv_pallas.1} parent=54 // loop_header_branch
                  %283 = sbr.rel (%p281) target = $region69
                $region66: #{cconv_pallas.1} parent=54 // loop_body
                  %v287 = vld [vmem:[%s285] sm:$0xf]
                  %288 = vst [vmem:[%s286] sm:$0xf] %v287
                  %v289 = vld [vmem:[%s285 + $0x10] sm:$0xf]
                  %290 = vst [vmem:[%s286 + $0x4] sm:$0xf] %v289
                $region67: #{cconv_pallas.1} parent=54 // loop_footer
                  %s284 = sadd.s32 1, %s280
                $region68: #{cconv_pallas.1} parent=54 // loop_footer_branch
                  %279 = sbr.rel target = $region64
                $region69: #{cconv_pallas.1} parent=54 // loop_exit
                  _
              $region55: #{cconv_pallas.1} parent=39 // pred_fallthru
                _
            $region40: #{cconv_pallas.1} parent=35 // pred_fallthru
              _
            // Predicated region
            $region41: #{cconv_pallas.1} parent=35 // pred_check
              _
            $region42: #{cconv_pallas.1} parent=35 // pred_check_branch
              %254 = sbr.rel (0) target = $region44
            $region43: #{cconv_pallas.1} parent=35 // pred_region
              loop: start=0, step=1, limit=1
              $region45: #{cconv_pallas.1} parent=43 // loop_pre_header
                _
              $region46: #{cconv_pallas.1} parent=43 // loop_header
                %s257 = sphi 0, %s261
                %p258 = scmp.ge.s32.totalorder %s257, 1
                %s262 = sphi %s248, %s248
                %s263 = sphi %s243, %s243
              $region47: #{cconv_pallas.1} parent=43 // loop_header_branch
                %260 = sbr.rel (%p258) target = $region51
              $region48: #{cconv_pallas.1} parent=43 // loop_body
                %v264 = vld [vmem:[%s262] sm:$0xf]
                %265 = vst [vmem:[%s263] sm:$0xf] %v264
                %v266 = vld [vmem:[%s262 + $0x10] sm:$0xf]
                %267 = vst [vmem:[%s263 + $0x4] sm:$0xf] %v266
              $region49: #{cconv_pallas.1} parent=43 // loop_footer
                %s261 = sadd.s32 1, %s257
              $region50: #{cconv_pallas.1} parent=43 // loop_footer_branch
                %256 = sbr.rel target = $region46
              $region51: #{cconv_pallas.1} parent=43 // loop_exit
                _
            $region44: #{cconv_pallas.1} parent=35 // pred_fallthru
              _
          $region36: #{cconv_pallas.1} parent=31 // pred_fallthru
            _
          %291 = vnop
        $region32: #{cconv_pallas.1} parent=27 // pred_fallthru
          _
        // Predicated region
        $region70: #{cconv_pallas.1} parent=27 // pred_check
          %p292 = pneg %p84
        $region71: #{cconv_pallas.1} parent=27 // pred_check_branch
          %294 = sbr.rel (%p292) target = $region73
        $region72: #{cconv_pallas.1} parent=27 // pred_region
          %s295 = sand.u32 %s74, 1
          %s296 = scalar_lea.sflag [#allocation4], %s295
          %s297 = sand.u32 %s74, 1
          %s298 = smul.addr %s297, 8
          %s299 = scalar_lea.vmem [#allocation3], %s298
          %s300 = smul.u32 2, %s29
          %s302 = ssub.s32 128, 128
          %303 = vsyncadd %s296, %s302
          %s304 = smul.addr %s300, 4
          %s305 = sadd.s32 %s30, %s304
          %s306 = smul.addr %s305, 64
          %s307 = scalar_lea.hbm %s1, %s306
          %s308 = sshll.u32 %s299, 4
          %s309 = int_to_ptr.vmem [resolvable:$true] %s308
          %314 = dma.hbm_to_vmem [thread:$0]  %s307, 128, %s309, %s296, 256, 64, 4
        $region73: #{cconv_pallas.1} parent=27 // pred_fallthru
          _
      $region28: #{cconv_pallas.1} parent=5 // pred_fallthru
        _
      %p315 = scmp.le.s32.totalorder 1, %s22
      %p316 = scmp.lt.s32.totalorder %s22, 9
      %p317 = pnand %p315, %p316
      %p318 = pneg %p317
      // Predicated region
      $region74: #{cconv_pallas.1} parent=5 // pred_check
        _
      $region75: #{cconv_pallas.1} parent=5 // pred_check_branch
        %320 = sbr.rel (%p317) target = $region77
      $region76: #{cconv_pallas.1} parent=5 // pred_region
        %s321 = ssub.s32 %s22, 1
        %s322 = sand.u32 %s49, 1
        %s323 = sand.u32 %s49, 1
        %s324 = smul.addr %s323, 8
        %s325 = scalar_lea.vmem [#allocation2], %s324
        // Predicated region
        $region78: #{cconv_pallas.1} parent=76 // pred_check
          %p326 = pneg %p62
        $region79: #{cconv_pallas.1} parent=76 // pred_check_branch
          %328 = sbr.rel (%p326) target = $region81
        $region80: #{cconv_pallas.1} parent=76 // pred_region
          _
        $region81: #{cconv_pallas.1} parent=76 // pred_fallthru
          _
        %s329 = sand.u32 %s77, 1
        %s330 = scalar_lea.sflag [#allocation4], %s329
        %s331 = sand.u32 %s77, 1
        %s332 = smul.addr %s331, 8
        %s333 = scalar_lea.vmem [#allocation3], %s332
        // Predicated region
        $region82: #{cconv_pallas.1} parent=76 // pred_check
          %p334 = pneg %p90
        $region83: #{cconv_pallas.1} parent=76 // pred_check_branch
          %336 = sbr.rel (%p334) target = $region85
        $region84: #{cconv_pallas.1} parent=76 // pred_region
          %337 = dma.done %s330, 128
        $region85: #{cconv_pallas.1} parent=76 // pred_fallthru
          _
        %s338 = sand.u32 %s49, 1
        %s339 = sand.u32 %s49, 1
        %s340 = smul.addr %s339, 8
        %s341 = scalar_lea.vmem [#allocation2], %s340
        %p342 = pneg %p62
        %p343 = pneg %p59
        %s344 = sand.u32 %s77, 1
        %s345 = scalar_lea.sflag [#allocation4], %s344
        %s346 = sand.u32 %s77, 1
        %s347 = smul.addr %s346, 8
        %s348 = scalar_lea.vmem [#allocation3], %s347
        %p349 = pneg %p90
        %p350 = pneg %p87
        %p351 = pneg %p111
        %p352 = pneg %p108
        %p353 = pneg %p132
        %p354 = pneg %p129
        %p355 = pneg %p153
        %p356 = pneg %p150
        %p357 = pneg %p181
        %p358 = pneg %p178
        %s359 = sand.u32 %s168, 1
        %s360 = scalar_lea.sflag [#allocation5], %s359
        %s361 = sand.u32 %s168, 1
        %s362 = smul.addr %s361, 16
        %s363 = scalar_lea.vmem [#allocation6], %s362
        %p364 = pneg %p209
        %p365 = pneg %p206
        %s366 = sand.u32 %s196, 1
        %s367 = scalar_lea.sflag [#allocation8], %s366
        %s368 = sand.u32 %s196, 1
        %s369 = smul.addr %s368, 16
        %s370 = scalar_lea.vmem [#allocation7], %s369
        %s371 = smul.u32 2, %s31
        %s372 = smul.u32 2, %s31
        %s373 = smul.u32 2, %s31
        %s374 = smul.u32 2, %s31
        %v375 = vld [vmem:[%s2] sm:$0xff]
        %v376 = vld [vmem:[%s2 + $0x8] sm:$0xff]
        %v377 = vld [vmem:[%s3] sm:$0xff]
        %v378 = vld [vmem:[%s3 + $0x8] sm:$0xff]
        %v379 = vld [vmem:[%s4] sm:$0xff]
        %v380 = vld [vmem:[%s4 + $0x8] sm:$0xff]
        %v381 = vld [vmem:[%s325] sm:$0xf]
        %v382 = vld [vmem:[%s333] sm:$0xf]
        %vm383 = vcmask 31744
        %v385 = vsel %vm383, %v377, 0
        %v388 = vsel %vm383, %v378, 0
        %vm390 = vcmask 1043456
        %v392 = vsel %vm390, %v382, 0
        %394 = vmatprep.subr.mxu0 0.0
        %395 = vmatpush1.msra.mxu0 %v392
        %396 = vmatprep.subr.mxu0 0.0
        %397 = vmatpush1.msra.mxu0 0.0
        %398 = vmatprep.subr.mxu0 0.0
        %399 = vmatpush1.msra.mxu0 0.0
        %400 = vmatprep.subr.mxu0 0.0
        %401 = vmatpush1.msra.mxu0 0.0
        %402 = vmatprep.subr.mxu0 0.0
        %403 = vmatpush1.msra.mxu0 0.0
        %404 = vmatprep.subr.mxu0 0.0
        %405 = vmatpush1.msra.mxu0 0.0
        %406 = vmatprep.subr.mxu0 0.0
        %407 = vmatpush1.msra.mxu0 0.0
        %408 = vmatprep.subr.mxu0 0.0
        %409 = vmatpush1.msra.mxu0 0.0
        %410 = vmatprep.subr.mxu0 0.0
        %411 = vmatpush1.msra.mxu0 0.0
        %412 = vmatprep.subr.mxu0 0.0
        %413 = vmatpush1.msra.mxu0 0.0
        %414 = vmatprep.subr.mxu0 0.0
        %415 = vmatpush1.msra.mxu0 0.0
        %416 = vmatprep.subr.mxu0 0.0
        %417 = vmatpush1.msra.mxu0 0.0
        %418 = vmatprep.subr.mxu0 0.0
        %419 = vmatpush1.msra.mxu0 0.0
        %420 = vmatprep.subr.mxu0 0.0
        %421 = vmatpush1.msra.mxu0 0.0
        %422 = vmatprep.subr.mxu0 0.0
        %423 = vmatpush1.msra.mxu0 0.0
        %424 = vmatprep.subr.mxu0 0.0
        %425 = vmatpush1.msra.mxu0 0.0
        %426 = vmatprep.subr.mxu0 0.0
        %427 = vmatpush1.msra.mxu0 0.0
        %428 = vmatprep.subr.mxu0 0.0
        %429 = vmatpush1.msra.mxu0 0.0
        %430 = vmatprep.subr.mxu0 0.0
        %431 = vmatpush1.msra.mxu0 0.0
        %432 = vmatprep.subr.mxu0 0.0
        %433 = vmatpush1.msra.mxu0 0.0
        %434 = vmatprep.subr.mxu0 0.0
        %435 = vmatpush1.msra.mxu0 0.0
        %436 = vmatprep.subr.mxu0 0.0
        %437 = vmatpush1.msra.mxu0 0.0
        %438 = vmatprep.subr.mxu0 0.0
        %439 = vmatpush1.msra.mxu0 0.0
        %440 = vmatprep.subr.mxu0 0.0
        %441 = vmatpush1.msra.mxu0 0.0
        %442 = vmatprep.subr.mxu0 0.0
        %443 = vmatpush1.msra.mxu0 0.0
        %444 = vmatprep.subr.mxu0 0.0
        %445 = vmatpush1.msra.mxu0 0.0
        %446 = vmatprep.subr.mxu0 0.0
        %447 = vmatpush1.msra.mxu0 0.0
        %448 = vmatprep.subr.mxu0 0.0
        %449 = vmatpush1.msra.mxu0 0.0
        %450 = vmatprep.subr.mxu0 0.0
        %451 = vmatpush1.msra.mxu0 0.0
        %452 = vmatprep.subr.mxu0 0.0
        %453 = vmatpush1.msra.mxu0 0.0
        %454 = vmatprep.subr.mxu0 0.0
        %455 = vmatpush1.msra.mxu0 0.0
        %456 = vmatprep.subr.mxu0 0.0
        %457 = vmatpush1.msra.mxu0 0.0
        %458 = vmatprep.mubr.f32.mxu0 0.0
        %459 = vmatmul.mubr.f32.gmra.mrb[0].mxu0 %v385
        %v460 = vpop.f32.mrb[0].mxu0
        %v461 = vadd.f32 0.0, %v460
        %v462 = vpop.f32.mrb[0].mxu0
        %463 = vmatprep.mubr.f32.mxu0 0.0
        %464 = vmatmul.mubr.f32.gmra.mrb[0].mxu0 %v388
        %v465 = vpop.f32.mrb[0].mxu0
        %v466 = vadd.f32 0.0, %v465
        %v467 = vpop.f32.mrb[0].mxu0
        %468 = vdwg.mxu0
        %v470 = vsel %vm383, %v375, 0
        %v473 = vsel %vm383, %v376, 0
        %v476 = vsel %vm390, %v381, 0
        %478 = vmatprep.subr.mxu0 0.0
        %479 = vmatpush1.msra.mxu0 %v476
        %480 = vmatprep.subr.mxu0 0.0
        %481 = vmatpush1.msra.mxu0 0.0
        %482 = vmatprep.subr.mxu0 0.0
        %483 = vmatpush1.msra.mxu0 0.0
        %484 = vmatprep.subr.mxu0 0.0
        %485 = vmatpush1.msra.mxu0 0.0
        %486 = vmatprep.subr.mxu0 0.0
        %487 = vmatpush1.msra.mxu0 0.0
        %488 = vmatprep.subr.mxu0 0.0
        %489 = vmatpush1.msra.mxu0 0.0
        %490 = vmatprep.subr.mxu0 0.0
        %491 = vmatpush1.msra.mxu0 0.0
        %492 = vmatprep.subr.mxu0 0.0
        %493 = vmatpush1.msra.mxu0 0.0
        %494 = vmatprep.subr.mxu0 0.0
        %495 = vmatpush1.msra.mxu0 0.0
        %496 = vmatprep.subr.mxu0 0.0
        %497 = vmatpush1.msra.mxu0 0.0
        %498 = vmatprep.subr.mxu0 0.0
        %499 = vmatpush1.msra.mxu0 0.0
        %500 = vmatprep.subr.mxu0 0.0
        %501 = vmatpush1.msra.mxu0 0.0
        %502 = vmatprep.subr.mxu0 0.0
        %503 = vmatpush1.msra.mxu0 0.0
        %504 = vmatprep.subr.mxu0 0.0
        %505 = vmatpush1.msra.mxu0 0.0
        %506 = vmatprep.subr.mxu0 0.0
        %507 = vmatpush1.msra.mxu0 0.0
        %508 = vmatprep.subr.mxu0 0.0
        %509 = vmatpush1.msra.mxu0 0.0
        %510 = vmatprep.subr.mxu0 0.0
        %511 = vmatpush1.msra.mxu0 0.0
        %512 = vmatprep.subr.mxu0 0.0
        %513 = vmatpush1.msra.mxu0 0.0
        %514 = vmatprep.subr.mxu0 0.0
        %515 = vmatpush1.msra.mxu0 0.0
        %516 = vmatprep.subr.mxu0 0.0
        %517 = vmatpush1.msra.mxu0 0.0
        %518 = vmatprep.subr.mxu0 0.0
        %519 = vmatpush1.msra.mxu0 0.0
        %520 = vmatprep.subr.mxu0 0.0
        %521 = vmatpush1.msra.mxu0 0.0
        %522 = vmatprep.subr.mxu0 0.0
        %523 = vmatpush1.msra.mxu0 0.0
        %524 = vmatprep.subr.mxu0 0.0
        %525 = vmatpush1.msra.mxu0 0.0
        %526 = vmatprep.subr.mxu0 0.0
        %527 = vmatpush1.msra.mxu0 0.0
        %528 = vmatprep.subr.mxu0 0.0
        %529 = vmatpush1.msra.mxu0 0.0
        %530 = vmatprep.subr.mxu0 0.0
        %531 = vmatpush1.msra.mxu0 0.0
        %532 = vmatprep.subr.mxu0 0.0
        %533 = vmatpush1.msra.mxu0 0.0
        %534 = vmatprep.subr.mxu0 0.0
        %535 = vmatpush1.msra.mxu0 0.0
        %536 = vmatprep.subr.mxu0 0.0
        %537 = vmatpush1.msra.mxu0 0.0
        %538 = vmatprep.subr.mxu0 0.0
        %539 = vmatpush1.msra.mxu0 0.0
        %540 = vmatprep.subr.mxu0 0.0
        %541 = vmatpush1.msra.mxu0 0.0
        %542 = vmatprep.mubr.f32.mxu0 0.0
        %543 = vmatmul.mubr.f32.gmra.mrb[0].mxu0 %v470
        %v544 = vpop.f32.mrb[0].mxu0
        %v545 = vadd.f32 %v461, %v544
        %v546 = vpop.f32.mrb[0].mxu0
        %547 = vmatprep.mubr.f32.mxu0 0.0
        %548 = vmatmul.mubr.f32.gmra.mrb[0].mxu0 %v473
        %v549 = vpop.f32.mrb[0].mxu0
        %v550 = vadd.f32 %v466, %v549
        %v551 = vpop.f32.mrb[0].mxu0
        %552 = vdwg.mxu0
        %554 = vset.pattern.permute.xlu0 0
        %555 = vperm.xlu0 %554, %v379
        %v556 = vpop.permute.xlu0 %555
        %559 = vset.pattern.permute.xlu0 0
        %560 = vperm.xlu0 %559, %v380
        %v561 = vpop.permute.xlu0 %560
        %v563 = vadd.f32 %v545, %v556
        %v564 = vadd.f32 %v550, %v561
        %565 = vst [vmem:[%s363] sm:$0xff] %v563
        %566 = vst [vmem:[%s370] sm:$0xff] %v564
        %s567 = scalar_lea.vmem %s325, 4 [#allocation2]
        %v568 = vld [vmem:[%s567] sm:$0xf]
        %s569 = scalar_lea.vmem %s333, 4 [#allocation3]
        %v570 = vld [vmem:[%s569] sm:$0xf]
        %v572 = vsel %vm390, %v570, 0
        %574 = vmatprep.subr.mxu0 0.0
        %575 = vmatpush1.msra.mxu0 %v572
        %576 = vmatprep.subr.mxu0 0.0
        %577 = vmatpush1.msra.mxu0 0.0
        %578 = vmatprep.subr.mxu0 0.0
        %579 = vmatpush1.msra.mxu0 0.0
        %580 = vmatprep.subr.mxu0 0.0
        %581 = vmatpush1.msra.mxu0 0.0
        %582 = vmatprep.subr.mxu0 0.0
        %583 = vmatpush1.msra.mxu0 0.0
        %584 = vmatprep.subr.mxu0 0.0
        %585 = vmatpush1.msra.mxu0 0.0
        %586 = vmatprep.subr.mxu0 0.0
        %587 = vmatpush1.msra.mxu0 0.0
        %588 = vmatprep.subr.mxu0 0.0
        %589 = vmatpush1.msra.mxu0 0.0
        %590 = vmatprep.subr.mxu0 0.0
        %591 = vmatpush1.msra.mxu0 0.0
        %592 = vmatprep.subr.mxu0 0.0
        %593 = vmatpush1.msra.mxu0 0.0
        %594 = vmatprep.subr.mxu0 0.0
        %595 = vmatpush1.msra.mxu0 0.0
        %596 = vmatprep.subr.mxu0 0.0
        %597 = vmatpush1.msra.mxu0 0.0
        %598 = vmatprep.subr.mxu0 0.0
        %599 = vmatpush1.msra.mxu0 0.0
        %600 = vmatprep.subr.mxu0 0.0
        %601 = vmatpush1.msra.mxu0 0.0
        %602 = vmatprep.subr.mxu0 0.0
        %603 = vmatpush1.msra.mxu0 0.0
        %604 = vmatprep.subr.mxu0 0.0
        %605 = vmatpush1.msra.mxu0 0.0
        %606 = vmatprep.subr.mxu0 0.0
        %607 = vmatpush1.msra.mxu0 0.0
        %608 = vmatprep.subr.mxu0 0.0
        %609 = vmatpush1.msra.mxu0 0.0
        %610 = vmatprep.subr.mxu0 0.0
        %611 = vmatpush1.msra.mxu0 0.0
        %612 = vmatprep.subr.mxu0 0.0
        %613 = vmatpush1.msra.mxu0 0.0
        %614 = vmatprep.subr.mxu0 0.0
        %615 = vmatpush1.msra.mxu0 0.0
        %616 = vmatprep.subr.mxu0 0.0
        %617 = vmatpush1.msra.mxu0 0.0
        %618 = vmatprep.subr.mxu0 0.0
        %619 = vmatpush1.msra.mxu0 0.0
        %620 = vmatprep.subr.mxu0 0.0
        %621 = vmatpush1.msra.mxu0 0.0
        %622 = vmatprep.subr.mxu0 0.0
        %623 = vmatpush1.msra.mxu0 0.0
        %624 = vmatprep.subr.mxu0 0.0
        %625 = vmatpush1.msra.mxu0 0.0
        %626 = vmatprep.subr.mxu0 0.0
        %627 = vmatpush1.msra.mxu0 0.0
        %628 = vmatprep.subr.mxu0 0.0
        %629 = vmatpush1.msra.mxu0 0.0
        %630 = vmatprep.subr.mxu0 0.0
        %631 = vmatpush1.msra.mxu0 0.0
        %632 = vmatprep.subr.mxu0 0.0
        %633 = vmatpush1.msra.mxu0 0.0
        %634 = vmatprep.subr.mxu0 0.0
        %635 = vmatpush1.msra.mxu0 0.0
        %636 = vmatprep.subr.mxu0 0.0
        %637 = vmatpush1.msra.mxu0 0.0
        %638 = vmatprep.mubr.f32.mxu0 0.0
        %639 = vmatmul.mubr.f32.gmra.mrb[0].mxu0 %v385
        %v640 = vpop.f32.mrb[0].mxu0
        %v641 = vadd.f32 0.0, %v640
        %v642 = vpop.f32.mrb[0].mxu0
        %643 = vmatprep.mubr.f32.mxu0 0.0
        %644 = vmatmul.mubr.f32.gmra.mrb[0].mxu0 %v388
        %v645 = vpop.f32.mrb[0].mxu0
        %v646 = vadd.f32 0.0, %v645
        %v647 = vpop.f32.mrb[0].mxu0
        %648 = vdwg.mxu0
        %v650 = vsel %vm390, %v568, 0
        %652 = vmatprep.subr.mxu0 0.0
        %653 = vmatpush1.msra.mxu0 %v650
        %654 = vmatprep.subr.mxu0 0.0
        %655 = vmatpush1.msra.mxu0 0.0
        %656 = vmatprep.subr.mxu0 0.0
        %657 = vmatpush1.msra.mxu0 0.0
        %658 = vmatprep.subr.mxu0 0.0
        %659 = vmatpush1.msra.mxu0 0.0
        %660 = vmatprep.subr.mxu0 0.0
        %661 = vmatpush1.msra.mxu0 0.0
        %662 = vmatprep.subr.mxu0 0.0
        %663 = vmatpush1.msra.mxu0 0.0
        %664 = vmatprep.subr.mxu0 0.0
        %665 = vmatpush1.msra.mxu0 0.0
        %666 = vmatprep.subr.mxu0 0.0
        %667 = vmatpush1.msra.mxu0 0.0
        %668 = vmatprep.subr.mxu0 0.0
        %669 = vmatpush1.msra.mxu0 0.0
        %670 = vmatprep.subr.mxu0 0.0
        %671 = vmatpush1.msra.mxu0 0.0
        %672 = vmatprep.subr.mxu0 0.0
        %673 = vmatpush1.msra.mxu0 0.0
        %674 = vmatprep.subr.mxu0 0.0
        %675 = vmatpush1.msra.mxu0 0.0
        %676 = vmatprep.subr.mxu0 0.0
        %677 = vmatpush1.msra.mxu0 0.0
        %678 = vmatprep.subr.mxu0 0.0
        %679 = vmatpush1.msra.mxu0 0.0
        %680 = vmatprep.subr.mxu0 0.0
        %681 = vmatpush1.msra.mxu0 0.0
        %682 = vmatprep.subr.mxu0 0.0
        %683 = vmatpush1.msra.mxu0 0.0
        %684 = vmatprep.subr.mxu0 0.0
        %685 = vmatpush1.msra.mxu0 0.0
        %686 = vmatprep.subr.mxu0 0.0
        %687 = vmatpush1.msra.mxu0 0.0
        %688 = vmatprep.subr.mxu0 0.0
        %689 = vmatpush1.msra.mxu0 0.0
        %690 = vmatprep.subr.mxu0 0.0
        %691 = vmatpush1.msra.mxu0 0.0
        %692 = vmatprep.subr.mxu0 0.0
        %693 = vmatpush1.msra.mxu0 0.0
        %694 = vmatprep.subr.mxu0 0.0
        %695 = vmatpush1.msra.mxu0 0.0
        %696 = vmatprep.subr.mxu0 0.0
        %697 = vmatpush1.msra.mxu0 0.0
        %698 = vmatprep.subr.mxu0 0.0
        %699 = vmatpush1.msra.mxu0 0.0
        %700 = vmatprep.subr.mxu0 0.0
        %701 = vmatpush1.msra.mxu0 0.0
        %702 = vmatprep.subr.mxu0 0.0
        %703 = vmatpush1.msra.mxu0 0.0
        %704 = vmatprep.subr.mxu0 0.0
        %705 = vmatpush1.msra.mxu0 0.0
        %706 = vmatprep.subr.mxu0 0.0
        %707 = vmatpush1.msra.mxu0 0.0
        %708 = vmatprep.subr.mxu0 0.0
        %709 = vmatpush1.msra.mxu0 0.0
        %710 = vmatprep.subr.mxu0 0.0
        %711 = vmatpush1.msra.mxu0 0.0
        %712 = vmatprep.subr.mxu0 0.0
        %713 = vmatpush1.msra.mxu0 0.0
        %714 = vmatprep.subr.mxu0 0.0
        %715 = vmatpush1.msra.mxu0 0.0
        %716 = vmatprep.mubr.f32.mxu0 0.0
        %717 = vmatmul.mubr.f32.gmra.mrb[0].mxu0 %v470
        %v718 = vpop.f32.mrb[0].mxu0
        %v719 = vadd.f32 %v641, %v718
        %v720 = vpop.f32.mrb[0].mxu0
        %721 = vmatprep.mubr.f32.mxu0 0.0
        %722 = vmatmul.mubr.f32.gmra.mrb[0].mxu0 %v473
        %v723 = vpop.f32.mrb[0].mxu0
        %v724 = vadd.f32 %v646, %v723
        %v725 = vpop.f32.mrb[0].mxu0
        %726 = vdwg.mxu0
        %v727 = vadd.f32 %v719, %v556
        %v728 = vadd.f32 %v724, %v561
        %s729 = scalar_lea.vmem %s363, 8 [#allocation6]
        %730 = vst [vmem:[%s729] sm:$0xff] %v727
        %s731 = scalar_lea.vmem %s370, 8 [#allocation7]
        %732 = vst [vmem:[%s731] sm:$0xff] %v728
        %s733 = sand.u32 %s168, 1
        %s734 = scalar_lea.sflag [#allocation5], %s733
        %s735 = sand.u32 %s168, 1
        %s736 = smul.addr %s735, 16
        %s737 = scalar_lea.vmem [#allocation6], %s736
        %s738 = sand.u32 %s196, 1
        %s739 = scalar_lea.sflag [#allocation8], %s738
        %s740 = sand.u32 %s196, 1
        %s741 = smul.addr %s740, 16
        %s742 = scalar_lea.vmem [#allocation7], %s741
        // Predicated region
        $region86: #{cconv_pallas.1} parent=76 // pred_check
          %p743 = pneg %p178
        $region87: #{cconv_pallas.1} parent=76 // pred_check_branch
          %745 = sbr.rel (%p743) target = $region89
        $region88: #{cconv_pallas.1} parent=76 // pred_region
          %s746 = smul.u32 2, %s31
          %s748 = ssub.s32 256, 256
          %749 = vsyncadd %s734, %s748
          %s750 = smul.addr %s746, 4
          %s751 = sadd.s32 %s32, %s750
          %s752 = smul.addr %s751, 128
          %s753 = scalar_lea.hbm %s5, %s752
          %s754 = sshll.u32 %s737, 4
          %s755 = int_to_ptr.vmem [resolvable:$true] %s754
          %760 = dma.vmem_to_hbm [thread:$0]  %s755, 256, %s753, %s734, 128, 512, 8
        $region89: #{cconv_pallas.1} parent=76 // pred_fallthru
          _
        // Predicated region
        $region90: #{cconv_pallas.1} parent=76 // pred_check
          %p761 = pneg %p206
        $region91: #{cconv_pallas.1} parent=76 // pred_check_branch
          %763 = sbr.rel (%p761) target = $region93
        $region92: #{cconv_pallas.1} parent=76 // pred_region
          %s764 = smul.u32 2, %s31
          %s766 = ssub.s32 256, 256
          %767 = vsyncadd %s739, %s766
          %s768 = smul.addr %s764, 4
          %s769 = sadd.s32 %s32, %s768
          %s770 = smul.addr %s769, 128
          %s771 = scalar_lea.hbm %s6, %s770
          %s772 = sshll.u32 %s742, 4
          %s773 = int_to_ptr.vmem [resolvable:$true] %s772
          %778 = dma.vmem_to_hbm [thread:$0]  %s773, 256, %s771, %s739, 128, 512, 8
        $region93: #{cconv_pallas.1} parent=76 // pred_fallthru
          _
      $region77: #{cconv_pallas.1} parent=5 // pred_fallthru
        _
      %p779 = scmp.le.s32.totalorder 2, %s22
      // Predicated region
      $region94: #{cconv_pallas.1} parent=5 // pred_check
        %p780 = pneg %p779
      $region95: #{cconv_pallas.1} parent=5 // pred_check_branch
        %782 = sbr.rel (%p780) target = $region97
      $region96: #{cconv_pallas.1} parent=5 // pred_region
        %s783 = ssub.s32 %s22, 2
        // Predicated region
        $region98: #{cconv_pallas.1} parent=96 // pred_check
          %p784 = pneg %p184
        $region99: #{cconv_pallas.1} parent=96 // pred_check_branch
          %786 = sbr.rel (%p784) target = $region101
        $region100: #{cconv_pallas.1} parent=96 // pred_region
          %s787 = sand.u32 %s169, 1
          %s788 = scalar_lea.sflag [#allocation5], %s787
          %s789 = sand.u32 %s169, 1
          %s790 = smul.addr %s789, 16
          %s791 = scalar_lea.vmem [#allocation6], %s790
          %792 = dma.done %s788, 256
        $region101: #{cconv_pallas.1} parent=96 // pred_fallthru
          _
        // Predicated region
        $region102: #{cconv_pallas.1} parent=96 // pred_check
          %p793 = pneg %p212
        $region103: #{cconv_pallas.1} parent=96 // pred_check_branch
          %795 = sbr.rel (%p793) target = $region105
        $region104: #{cconv_pallas.1} parent=96 // pred_region
          %s796 = sand.u32 %s197, 1
          %s797 = scalar_lea.sflag [#allocation8], %s796
          %s798 = sand.u32 %s197, 1
          %s799 = smul.addr %s798, 16
          %s800 = scalar_lea.vmem [#allocation7], %s799
          %801 = dma.done %s797, 256
        $region105: #{cconv_pallas.1} parent=96 // pred_fallthru
          _
      $region97: #{cconv_pallas.1} parent=5 // pred_fallthru
        _
    $region6: #{cconv_pallas.1} parent=1 // loop_footer
      %s26 = sadd.s32 1, %s22
    $region7: #{cconv_pallas.1} parent=1 // loop_footer_branch
      %21 = sbr.rel target = $region3
    $region8: #{cconv_pallas.1} parent=1 // loop_exit
      _
    %802 = vsyncpa [#allocation4], 1
    %s803 = scalar_lea.sflag [#allocation4], 1
    %804 = vsyncpa %s803, 1
    %805 = vsyncpa [#allocation5], 1
    %s806 = scalar_lea.sflag [#allocation5], 1
    %807 = vsyncpa %s806, 1
    %808 = vsyncpa [#allocation8], 1
    %s809 = scalar_lea.sflag [#allocation8], 1
    %810 = vsyncpa %s809, 1

</llo_original>
